<compile_context>
chip_gen: v7x
topology: tpu7x:2x2x1
jax: 0.10.0
libtpu: 0.0.40
codegen_flags: <defaults>
</compile_context>

<pallas_src>
import math

import jax
import jax.numpy as jnp
from jax.experimental import pallas as pl
from jax.experimental.pallas import tpu as pltpu


# ---------------------------------------------------------------------------
# Kernel 1: adaptive adjacency + Chebyshev supports, (N, N), computed once.
# ---------------------------------------------------------------------------
def _supports_kernel(e_ref, sup_ref):
    """sup[0] = softmax(relu(E @ E.T), axis=1); sup[k] = Chebyshev T_{k+1}.

    T_0 = I is applied implicitly by the cell kernel (the order-0 term of the
    aggregation is the raw input), so it is never materialized.
    """
    f32 = jnp.float32
    e = e_ref[...].astype(f32)
    n = e.shape[0]
    n_sup = sup_ref.shape[0]                       # cheb_k - 1

    # E @ E.T via an NT-style contraction (no explicit transpose op).
    g = jax.lax.dot_general(e, e, (((1,), (1,)), ((), ())),
                            preferred_element_type=f32)
    g = jnp.maximum(g, 0.0)
    g = g - jnp.max(g, axis=1, keepdims=True)
    eg = jnp.exp(g)
    s = eg / jnp.sum(eg, axis=1, keepdims=True)    # exact divide (correctness)
    sup_ref[0] = s

    if n_sup > 1:
        row = jax.lax.broadcasted_iota(jnp.int32, (n, n), 0)
        col = jax.lax.broadcasted_iota(jnp.int32, (n, n), 1)
        eye = jnp.where(row == col, 1.0, 0.0).astype(f32)
        prev2, prev = eye, s
        for k in range(1, n_sup):
            cur = 2.0 * jnp.dot(s, prev, preferred_element_type=f32) - prev2
            sup_ref[k] = cur
            prev2, prev = prev, cur


# ---------------------------------------------------------------------------
# Kernel 2: one batch element of the AGCRN GRU cell (grid over batch).
# ---------------------------------------------------------------------------
def _agcrn_cell_kernel(e_ref, sup_ref, x_ref, s_ref,
                       wx_ref, wsg_ref, wsu_ref, bg_ref, bu_ref, out_ref):
    """Per-batch AGCRN cell.

    e:   (N, D)          sup: (K-1, N, N)
    x:   (1, N, Ci)      s:   (1, N, H)
    wx:  (K*Ci, D*3H)    x-side columns, [gate 2H | update H] per embed dim d
    wsg: (K*H,  D*2H)    state-side gate columns
    wsu: (K*H,  D*H)     state-side update (candidate) columns
    bg:  (N, 2H) = E @ gate_bias     bu: (N, H) = E @ update_bias
    out: (1, N, H)
    """
    f32 = jnp.float32
    x = x_ref[0].astype(f32)                       # (N, Ci)
    s = s_ref[0].astype(f32)                       # (N, H)
    e = e_ref[...].astype(f32)                     # (N, D)
    h_dim = s.shape[-1]
    ci = x.shape[-1]
    d_dim = e.shape[-1]
    n_sup = sup_ref.shape[0]                       # cheb_k - 1
    k_cheb = n_sup + 1

    sups = [sup_ref[k].astype(f32) for k in range(n_sup)]

    def aggregate(v):
        # Per-Chebyshev-order graph aggregation; order 0 (identity support)
        # is the raw input => no identity matmul, no lane-axis concatenation.
        return [v] + [jnp.dot(m, v, preferred_element_type=f32) for m in sups]

    def gconv(parts, w_ref, cin):
        # sum_k parts[k] @ W_k, the K row-blocks of W stacked along the
        # sublane axis of w_ref (static pl.ds slices -> plain VMEM loads).
        t = jnp.dot(parts[0], w_ref[pl.ds(0, cin), :],
                    preferred_element_type=f32)
        for k in range(1, k_cheb):
            t = t + jnp.dot(parts[k], w_ref[pl.ds(k * cin, cin), :],
                            preferred_element_type=f32)
        return t

    def contract_embed(t, width):
        # Node-dependent mixing over the embed dim: D lane-local FMAs on the
        # un-inflated matmul output (columns are d-major, o-minor).
        acc = e[:, 0:1] * t[:, 0:width]
        for d in range(1, d_dim):
            acc = acc + e[:, d:d + 1] * t[:, d * width:(d + 1) * width]
        return acc

    xg = aggregate(x)
    sg = aggregate(s)

    # x-side contributions to gate (2H) and update (H), fused into one wide
    # MXU matmul; split only after the embed-dim contraction.
    tx = contract_embed(gconv(xg, wx_ref, ci), 3 * h_dim)        # (N, 3H)
    tsg = contract_embed(gconv(sg, wsg_ref, h_dim), 2 * h_dim)   # (N, 2H)

    zr = jax.nn.sigmoid(tx[:, :2 * h_dim] + tsg + bg_ref[...].astype(f32))
    z = zr[:, :h_dim]
    r = zr[:, h_dim:]

    zsg = aggregate(z * s)                                       # candidate state part
    tsu = contract_embed(gconv(zsg, wsu_ref, h_dim), h_dim)      # (N, H)
    hc = jnp.tanh(tx[:, 2 * h_dim:] + tsu + bu_ref[...].astype(f32))

    out_ref[0] = (r * s + (1.0 - r) * hc).astype(out_ref.dtype)


# ---------------------------------------------------------------------------
# Wrappers
# ---------------------------------------------------------------------------
def prepare_agcrn_cell_params(node_embeddings, gate_w, gate_b, upd_w, upd_b, *,
                              dim_in, cheb_k):
    """One-time preprocessing (per model / per forward, NOT per timestep).

    When the cell is scanned over time, call this once outside the scan and
    feed the result to agcrn_cell_apply every step.
    """
    f32 = jnp.float32
    n_nodes, d_emb = node_embeddings.shape
    h_dim = upd_w.shape[-1]
    c_in = dim_in + h_dim
    assert cheb_k >= 2, "AGCRN support set always has at least [I, A]"
    assert gate_w.shape == (d_emb, cheb_k, c_in, 2 * h_dim)
    assert gate_b.shape == (d_emb, 2 * h_dim)
    assert upd_w.shape == (d_emb, cheb_k, c_in, h_dim)
    assert upd_b.shape == (d_emb, h_dim)

    e = node_embeddings.astype(f32)
    gw = gate_w.astype(f32)
    uw = upd_w.astype(f32)

    def repack(w4):
        # (D, K, Cpart, O) -> (K*Cpart, D*O): rows (k, i), columns d-major.
        d_, k_, c_, o_ = w4.shape
        return jnp.transpose(w4, (1, 2, 0, 3)).reshape(k_ * c_, d_ * o_)

    # x-side columns of the gate and update heads fused into a single RHS.
    wx = repack(jnp.concatenate([gw[:, :, :dim_in, :], uw[:, :, :dim_in, :]],
                                axis=-1))                  # (K*Ci, D*3H)
    wsg = repack(gw[:, :, dim_in:, :])                     # (K*H,  D*2H)
    wsu = repack(uw[:, :, dim_in:, :])                     # (K*H,  D*H)

    # Node-dependent biases computed once (removes depth-8 MXU passes from
    # the kernel).  Full-precision dot: these feed the accuracy check.
    hp = jax.lax.Precision.HIGHEST
    bg = jnp.dot(e, gate_b.astype(f32), precision=hp)      # (N, 2H)
    bu = jnp.dot(e, upd_b.astype(f32), precision=hp)       # (N, H)

    # Adaptive adjacency + Chebyshev supports at (N, N): batch independent,
    # computed once per forward in a one-shot Pallas kernel.
    vmem = pl.BlockSpec(memory_space=pltpu.MemorySpace.VMEM)
    sup = pl.pallas_call(
        _supports_kernel,
        out_shape=jax.ShapeDtypeStruct((cheb_k - 1, n_nodes, n_nodes), f32),
        in_specs=[vmem],
        out_specs=vmem,
    )(e)

    return dict(e=e, sup=sup, wx=wx, wsg=wsg, wsu=wsu, bg=bg, bu=bu,
                dim_in=dim_in, cheb_k=cheb_k, hidden=h_dim)


def agcrn_cell_apply(params, x, state):
    """Per-timestep AGCRN cell: returns the new hidden state (B, N, H)."""
    f32 = jnp.float32
    out_dtype = state.dtype
    b, n_nodes, dim_in = x.shape
    h_dim = params["hidden"]
    x2 = x.astype(f32)
    s2 = state.astype(f32)

    def whole(arr):
        ndim = arr.ndim
        return pl.BlockSpec(arr.shape, lambda bb: (0,) * ndim)

    h = pl.pallas_call(
        _agcrn_cell_kernel,
        grid=(b,),
        out_shape=jax.ShapeDtypeStruct((b, n_nodes, h_dim), f32),
        in_specs=[
            whole(params["e"]),
            whole(params["sup"]),
            pl.BlockSpec((1, n_nodes, dim_in), lambda bb: (bb, 0, 0)),
            pl.BlockSpec((1, n_nodes, h_dim), lambda bb: (bb, 0, 0)),
            whole(params["wx"]),
            whole(params["wsg"]),
            whole(params["wsu"]),
            whole(params["bg"]),
            whole(params["bu"]),
        ],
        out_specs=pl.BlockSpec((1, n_nodes, h_dim), lambda bb: (bb, 0, 0)),
        compiler_params=pltpu.CompilerParams(
            dimension_semantics=("parallel",)),
    )(params["e"], params["sup"], x2, s2, params["wx"], params["wsg"],
      params["wsu"], params["bg"], params["bu"])
    return h.astype(out_dtype)


def agcrn_cell(x, state, node_embeddings, gate_w, gate_b, upd_w, upd_b, *,
               cheb_k):
    """Drop-in single-step forward matching AGCRNCell.forward."""
    params = prepare_agcrn_cell_params(node_embeddings, gate_w, gate_b,
                                       upd_w, upd_b, dim_in=x.shape[-1],
                                       cheb_k=cheb_k)
    return agcrn_cell_apply(params, x, state)


# ---------------------------------------------------------------------------
# Pure-JAX reference (mirrors the PyTorch forward) + demo / self-check
# ---------------------------------------------------------------------------
def agcrn_cell_ref(x, state, node_embeddings, gate_w, gate_b, upd_w, upd_b,
                   cheb_k):
    e = node_embeddings
    n = e.shape[0]
    s_adj = jax.nn.softmax(jax.nn.relu(e @ e.T), axis=1)
    sup = [jnp.eye(n, dtype=x.dtype), s_adj]
    for _ in range(2, cheb_k):
        sup.append(2.0 * s_adj @ sup[-1] - sup[-2])
    sup = jnp.stack(sup, 0)

    def avwgcn(xin, wp, bp):
        w = jnp.einsum('nd,dkio->nkio', e, wp)
        b = e @ bp
        xg = jnp.einsum('knm,bmc->bknc', sup, xin).transpose(0, 2, 1, 3)
        return jnp.einsum('bnki,nkio->bno', xg, w) + b

    h_dim = state.shape[-1]
    xs = jnp.concatenate([x, state], -1)
    zr = jax.nn.sigmoid(avwgcn(xs, gate_w, gate_b))
    z, r = zr[..., :h_dim], zr[..., h_dim:]
    cand = jnp.concatenate([x, z * state], -1)
    hc = jnp.tanh(avwgcn(cand, upd_w, upd_b))
    return r * state + (1.0 - r) * hc


def _xavier_normal(key, shape):
    # matches torch.nn.init.xavier_normal_ fan computation
    if len(shape) == 2:
        fan_in, fan_out = shape[1], shape[0]
    else:
        rf = math.prod(shape[2:])
        fan_in, fan_out = shape[1] * rf, shape[0] * rf
    std = math.sqrt(2.0 / (fan_in + fan_out))
    return std * jax.random.normal(key, shape, jnp.float32)


if __name__ == "__main__":
    # AGCRNCell(node_num=16, dim_in=4, dim_out=32, cheb_k=3, embed_dim=8), B=2
    N, DIM_IN, HID, CHEB_K, EMBED, B = 16, 4, 32, 3, 8, 2
    C = DIM_IN + HID

    key = jax.random.PRNGKey(0)
    ks = jax.random.split(key, 7)
    gate_w = _xavier_normal(ks[0], (EMBED, CHEB_K, C, 2 * HID))
    gate_b = _xavier_normal(ks[1], (EMBED, 2 * HID))
    upd_w = _xavier_normal(ks[2], (EMBED, CHEB_K, C, HID))
    upd_b = _xavier_normal(ks[3], (EMBED, HID))
    node_emb = jax.random.normal(ks[4], (N, EMBED), jnp.float32)
    x = jax.random.normal(ks[5], (B, N, DIM_IN), jnp.float32)
    state = jax.random.normal(ks[6], (B, N, HID), jnp.float32)

    h = agcrn_cell(x, state, node_emb, gate_w, gate_b, upd_w, upd_b,
                   cheb_k=CHEB_K)
    h = jax.block_until_ready(h)

    # Reference under full f32 matmul precision (XLA:TPU's default reduced
    # precision would otherwise dominate the comparison error).
    with jax.default_matmul_precision("highest"):
        h_ref = agcrn_cell_ref(x, state, node_emb, gate_w, gate_b, upd_w,
                               upd_b, CHEB_K)
    h_ref = jax.block_until_ready(h_ref)

    # Tolerance leaves headroom for reduced-precision matmul fallbacks in
    # emulation/interpret paths; on hardware the f32 kernel matches ~1e-5.
    if not bool(jnp.allclose(h, h_ref, rtol=1e-2, atol=1e-2)):
        err = float(jnp.max(jnp.abs(h - h_ref)))
        raise AssertionError(
            f"Pallas AGCRNCell does not match JAX reference (max err {err:.3e})")
    print("KERNEL_OK")
</pallas_src>

<mosaic_0001>
module attributes {stable_mosaic.version = 11 : i64} {
  func.func @_supports_kernel(%arg0: memref<16x8xf32, #tpu.memory_space<vmem>>, %arg1: memref<2x16x16xf32, #tpu.memory_space<vmem>>) attributes {dimension_semantics = [], scalar_prefetch = 0 : i64, scratch_operands = 0 : i64, tpu.core_type = #tpu.core_type<tc>} {
    %c0 = arith.constant 0 : index
    %c0_0 = arith.constant 0 : index
    %0 = vector.load %arg0[%c0, %c0_0] : memref<16x8xf32, #tpu.memory_space<vmem>>, vector<16x8xf32>
    %cst = arith.constant dense<0.000000e+00> : vector<16x16xf32>
    %1 = tpu.matmul %0, %0, %cst {dimension_numbers = #tpu.dot_dimension_numbers<[1], [1], [0], [0], [0, 0, 1, 0], [], []>} : vector<16x8xf32>, vector<16x8xf32>, vector<16x16xf32> -> vector<16x16xf32>
    %cst_1 = arith.constant 0.000000e+00 : f32
    %2 = vector.broadcast %cst_1 : f32 to vector<16x16xf32>
    %3 = arith.maximumf %1, %2 : vector<16x16xf32>
    %cst_2 = arith.constant dense<0xFF800000> : vector<16xf32>
    %4 = vector.multi_reduction <maximumf>, %3, %cst_2 [1] : vector<16x16xf32> to vector<16xf32>
    %5 = vector.shape_cast %4 : vector<16xf32> to vector<16x1xf32>
    %6 = vector.broadcast %5 : vector<16x1xf32> to vector<16x16xf32>
    %7 = arith.subf %3, %6 : vector<16x16xf32>
    %8 = math.exp %7 : vector<16x16xf32>
    %cst_3 = arith.constant dense<0.000000e+00> : vector<16xf32>
    %9 = vector.multi_reduction <add>, %8, %cst_3 [1] : vector<16x16xf32> to vector<16xf32>
    %10 = vector.shape_cast %9 : vector<16xf32> to vector<16x1xf32>
    %11 = vector.broadcast %10 : vector<16x1xf32> to vector<16x16xf32>
    %12 = arith.divf %8, %11 : vector<16x16xf32>
    %c0_4 = arith.constant 0 : index
    %c0_5 = arith.constant 0 : index
    %c0_6 = arith.constant 0 : index
    %13 = vector.load %arg1[%c0_4, %c0_5, %c0_6] : memref<2x16x16xf32, #tpu.memory_space<vmem>>, vector<1x16x16xf32>
    %14 = vector.shape_cast %13 : vector<1x16x16xf32> to vector<16x16xf32>
    %15 = vector.shape_cast %12 : vector<16x16xf32> to vector<1x16x16xf32>
    tpu.vector_store %arg1[%c0_4, %c0_5, %c0_6], %15 {strides = array<i32>} : memref<2x16x16xf32, #tpu.memory_space<vmem>>, vector<1x16x16xf32>,
    %16 = tpu.iota {dimensions = array<i32: 0>} : vector<16x16xi32>
    %17 = tpu.iota {dimensions = array<i32: 1>} : vector<16x16xi32>
    %18 = arith.cmpi eq, %16, %17 : vector<16x16xi32>
    %cst_7 = arith.constant 1.000000e+00 : f32
    %cst_8 = arith.constant 0.000000e+00 : f32
    %19 = vector.broadcast %cst_7 : f32 to vector<16x16xf32>
    %20 = vector.broadcast %cst_8 : f32 to vector<16x16xf32>
    %21 = arith.select %18, %19, %20 : vector<16x16xi1>, vector<16x16xf32>
    %cst_9 = arith.constant dense<0.000000e+00> : vector<16x16xf32>
    %22 = tpu.matmul %12, %12, %cst_9 {dimension_numbers = #tpu.dot_dimension_numbers<[1], [0], [0], [1], [0, 0, 1, 1], [], []>} : vector<16x16xf32>, vector<16x16xf32>, vector<16x16xf32> -> vector<16x16xf32>
    %cst_10 = arith.constant 2.000000e+00 : f32
    %23 = vector.broadcast %cst_10 : f32 to vector<16x16xf32>
    %24 = arith.mulf %23, %22 : vector<16x16xf32>
    %25 = arith.subf %24, %21 : vector<16x16xf32>
    %c1 = arith.constant 1 : index
    %c0_11 = arith.constant 0 : index
    %c0_12 = arith.constant 0 : index
    %26 = vector.load %arg1[%c1, %c0_11, %c0_12] : memref<2x16x16xf32, #tpu.memory_space<vmem>>, vector<1x16x16xf32>
    %27 = vector.shape_cast %26 : vector<1x16x16xf32> to vector<16x16xf32>
    %28 = vector.shape_cast %25 : vector<16x16xf32> to vector<1x16x16xf32>
    tpu.vector_store %arg1[%c1, %c0_11, %c0_12], %28 {strides = array<i32>} : memref<2x16x16xf32, #tpu.memory_space<vmem>>, vector<1x16x16xf32>,
    return
  }
}

</mosaic_0001>

<llo_original>
// kernel: tpu_custom_call.1
$region0: #{tpu_custom_call.1}
  #allocation0 [shape = 'u32[]', space=smem, size = 0x4, offset = 0x4, fixed_abs, tag = 'smem constant byte address 0x4 - core index']
  #allocation1 [shape = 'u32[144,128]{1,0:T(1,128)}', space=vmem, size = 0x12000, scoped, tag = 'internal scratch']
  %s0 = inlined_call_operand.vmem [shape: f32[16,8], index: 0, kind: input, shape index: {}]
  %s1 = inlined_call_operand.hbm [shape: f32[2,16,16], index: 1, kind: output, shape index: {}]
  %s2 = sld [smem:[#allocation0]]
  $region14: #{tpu_custom_call.1} parent=0
    _
  %s4 = ssub.s32 1, %s2
  %s5 = scalar_select 0, %s4, %s2
  $region1: #{tpu_custom_call.1} parent=0
    #allocation2 [shape = 'u8[16384]{0}', space=vmem, size = 0x4000, scoped, tag = 'output window, operand 0, single buffered']
    #allocation3 [shape = 's32[1]{0}', space=sflag, size = 0x4, scoped, tag = 'scoped memory for tpu_custom_call.1']
    %6 = vsyncpa [#allocation3], 0
    // Predicated region
    $region2: #{tpu_custom_call.1} parent=1 // pred_check
      _
    $region3: #{tpu_custom_call.1} parent=1 // pred_check_branch
      %8 = sbr.rel (0) target = $region5
    $region4: #{tpu_custom_call.1} parent=1 // pred_region
      _
    $region5: #{tpu_custom_call.1} parent=1 // pred_fallthru
      _
    %v9 = vld [vmem:[%s0] sm:$0xff]
    %v10 = vld [vmem:[%s0 + $0x8] sm:$0xff]
    %vm11 = vcmask 64512
    %v13 = vsel %vm11, %v9, 0
    %v16 = vsel %vm11, %v10, 0
    %18 = vmatprep.subr.mxu0 0.0
    %19 = vmatpush1.xpose.msra.mxu0 %v13
    %20 = vmatprep.subr.mxu0 0.0
    %21 = vmatpush1.xpose.msra.mxu0 %v16
    %22 = vmatprep.subr.mxu0 0.0
    %23 = vmatpush1.xpose.msra.mxu0 0.0
    %24 = vmatprep.subr.mxu0 0.0
    %25 = vmatpush1.xpose.msra.mxu0 0.0
    %26 = vmatprep.subr.mxu0 0.0
    %27 = vmatpush1.xpose.msra.mxu0 0.0
    %28 = vmatprep.subr.mxu0 0.0
    %29 = vmatpush1.xpose.msra.mxu0 0.0
    %30 = vmatprep.subr.mxu0 0.0
    %31 = vmatpush1.xpose.msra.mxu0 0.0
    %32 = vmatprep.subr.mxu0 0.0
    %33 = vmatpush1.xpose.msra.mxu0 0.0
    %34 = vmatprep.subr.mxu0 0.0
    %35 = vmatpush1.xpose.msra.mxu0 0.0
    %36 = vmatprep.subr.mxu0 0.0
    %37 = vmatpush1.xpose.msra.mxu0 0.0
    %38 = vmatprep.subr.mxu0 0.0
    %39 = vmatpush1.xpose.msra.mxu0 0.0
    %40 = vmatprep.subr.mxu0 0.0
    %41 = vmatpush1.xpose.msra.mxu0 0.0
    %42 = vmatprep.subr.mxu0 0.0
    %43 = vmatpush1.xpose.msra.mxu0 0.0
    %44 = vmatprep.subr.mxu0 0.0
    %45 = vmatpush1.xpose.msra.mxu0 0.0
    %46 = vmatprep.subr.mxu0 0.0
    %47 = vmatpush1.xpose.msra.mxu0 0.0
    %48 = vmatprep.subr.mxu0 0.0
    %49 = vmatpush1.xpose.msra.mxu0 0.0
    %50 = vmatprep.subr.mxu0 0.0
    %51 = vmatpush1.xpose.msra.mxu0 0.0
    %52 = vmatprep.subr.mxu0 0.0
    %53 = vmatpush1.xpose.msra.mxu0 0.0
    %54 = vmatprep.subr.mxu0 0.0
    %55 = vmatpush1.xpose.msra.mxu0 0.0
    %56 = vmatprep.subr.mxu0 0.0
    %57 = vmatpush1.xpose.msra.mxu0 0.0
    %58 = vmatprep.subr.mxu0 0.0
    %59 = vmatpush1.xpose.msra.mxu0 0.0
    %60 = vmatprep.subr.mxu0 0.0
    %61 = vmatpush1.xpose.msra.mxu0 0.0
    %62 = vmatprep.subr.mxu0 0.0
    %63 = vmatpush1.xpose.msra.mxu0 0.0
    %64 = vmatprep.subr.mxu0 0.0
    %65 = vmatpush1.xpose.msra.mxu0 0.0
    %66 = vmatprep.subr.mxu0 0.0
    %67 = vmatpush1.xpose.msra.mxu0 0.0
    %68 = vmatprep.subr.mxu0 0.0
    %69 = vmatpush1.xpose.msra.mxu0 0.0
    %70 = vmatprep.subr.mxu0 0.0
    %71 = vmatpush1.xpose.msra.mxu0 0.0
    %72 = vmatprep.subr.mxu0 0.0
    %73 = vmatpush1.xpose.msra.mxu0 0.0
    %74 = vmatprep.subr.mxu0 0.0
    %75 = vmatpush1.xpose.msra.mxu0 0.0
    %76 = vmatprep.subr.mxu0 0.0
    %77 = vmatpush1.xpose.msra.mxu0 0.0
    %78 = vmatprep.subr.mxu0 0.0
    %79 = vmatpush1.xpose.msra.mxu0 0.0
    %80 = vmatprep.subr.mxu0 0.0
    %81 = vmatpush1.xpose.msra.mxu0 0.0
    %82 = vmatprep.mubr.f32.mxu0 0.0
    %83 = vmatmul.mubr.f32.gmra.mrb[0].mxu0 %v13
    %v84 = vpop.f32.mrb[0].mxu0
    %v85 = vadd.f32 0.0, %v84
    %v86 = vpop.f32.mrb[0].mxu0
    %87 = vmatprep.mubr.f32.mxu0 0.0
    %88 = vmatmul.mubr.f32.gmra.mrb[0].mxu0 %v16
    %v89 = vpop.f32.mrb[0].mxu0
    %v90 = vadd.f32 0.0, %v89
    %v91 = vpop.f32.mrb[0].mxu0
    %92 = vdwg.mxu0
    %v93 = vmax.f32 %v85, 0.0
    %v94 = vmax.f32 %v90, 0.0
    %vm95 = vcmask 130048
    %v96 = vsel %vm95, %v93, -inf
    %97 = vmax.xlane.f32.xlu0 %v96
    %v98 = vpop.xlane.xlu0 %97
    %v99 = vsel %vm95, %v94, -inf
    %100 = vmax.xlane.f32.xlu0 %v99
    %v101 = vpop.xlane.xlu0 %100
    %v102 = vsub.f32 %v93, %v98
    %v103 = vsub.f32 %v94, %v101
    %v104 = vmul.f32 %v102, 1.442695
    %v105 = vpow.pop %v104
    %v106 = vmul.f32 %v103, 1.442695
    %v107 = vpow.pop %v106
    %v108 = vsel %vm95, %v105, 0.0
    %109 = vadd.xlane.f32.xlu0 %v108
    %v110 = vpop.xlane.xlu0 %109
    %v111 = vsel %vm95, %v107, 0.0
    %112 = vadd.xlane.f32.xlu0 %v111
    %v113 = vpop.xlane.xlu0 %112
    %v114 = vrcp.pop %v110
    %v115 = vmul.f32 %v105, %v114
    %v116 = vrcp.pop %v113
    %v117 = vmul.f32 %v107, %v116
    %118 = vst.msk [vmem:[#allocation2] sm:$0xff] %vm95, %v115
    %119 = vst.msk [vmem:[#allocation2 + $0x8] sm:$0xff] %vm95, %v117
    %v120 = vlaneseq
    %v121 = vshrl.u32 %v120, 7
    %v122 = vadd.s32 %v121, 8
    %v123 = vlaneseq
    %v124 = vand.u32 %v123, 127
    %vm125 = vcmp.eq.s32.totalorder %v121, %v124
    %vm126 = vcmp.eq.s32.totalorder %v122, %v124
    %v127 = vsel %vm125, 1.0, 0.0
    %v128 = vsel %vm126, 1.0, 0.0
    %v130 = vsel %vm95, %v115, 0
    %v133 = vsel %vm95, %v117, 0
    %135 = vmatprep.subr.mxu0 0.0
    %136 = vmatpush1.msra.mxu0 %v115
    %137 = vmatprep.subr.mxu0 0.0
    %138 = vmatpush1.msra.mxu0 %v117
    %139 = vmatprep.subr.mxu0 0.0
    %140 = vmatpush1.msra.mxu0 0.0
    %141 = vmatprep.subr.mxu0 0.0
    %142 = vmatpush1.msra.mxu0 0.0
    %143 = vmatprep.subr.mxu0 0.0
    %144 = vmatpush1.msra.mxu0 0.0
    %145 = vmatprep.subr.mxu0 0.0
    %146 = vmatpush1.msra.mxu0 0.0
    %147 = vmatprep.subr.mxu0 0.0
    %148 = vmatpush1.msra.mxu0 0.0
    %149 = vmatprep.subr.mxu0 0.0
    %150 = vmatpush1.msra.mxu0 0.0
    %151 = vmatprep.subr.mxu0 0.0
    %152 = vmatpush1.msra.mxu0 0.0
    %153 = vmatprep.subr.mxu0 0.0
    %154 = vmatpush1.msra.mxu0 0.0
    %155 = vmatprep.subr.mxu0 0.0
    %156 = vmatpush1.msra.mxu0 0.0
    %157 = vmatprep.subr.mxu0 0.0
    %158 = vmatpush1.msra.mxu0 0.0
    %159 = vmatprep.subr.mxu0 0.0
    %160 = vmatpush1.msra.mxu0 0.0
    %161 = vmatprep.subr.mxu0 0.0
    %162 = vmatpush1.msra.mxu0 0.0
    %163 = vmatprep.subr.mxu0 0.0
    %164 = vmatpush1.msra.mxu0 0.0
    %165 = vmatprep.subr.mxu0 0.0
    %166 = vmatpush1.msra.mxu0 0.0
    %167 = vmatprep.subr.mxu0 0.0
    %168 = vmatpush1.msra.mxu0 0.0
    %169 = vmatprep.subr.mxu0 0.0
    %170 = vmatpush1.msra.mxu0 0.0
    %171 = vmatprep.subr.mxu0 0.0
    %172 = vmatpush1.msra.mxu0 0.0
    %173 = vmatprep.subr.mxu0 0.0
    %174 = vmatpush1.msra.mxu0 0.0
    %175 = vmatprep.subr.mxu0 0.0
    %176 = vmatpush1.msra.mxu0 0.0
    %177 = vmatprep.subr.mxu0 0.0
    %178 = vmatpush1.msra.mxu0 0.0
    %179 = vmatprep.subr.mxu0 0.0
    %180 = vmatpush1.msra.mxu0 0.0
    %181 = vmatprep.subr.mxu0 0.0
    %182 = vmatpush1.msra.mxu0 0.0
    %183 = vmatprep.subr.mxu0 0.0
    %184 = vmatpush1.msra.mxu0 0.0
    %185 = vmatprep.subr.mxu0 0.0
    %186 = vmatpush1.msra.mxu0 0.0
    %187 = vmatprep.subr.mxu0 0.0
    %188 = vmatpush1.msra.mxu0 0.0
    %189 = vmatprep.subr.mxu0 0.0
    %190 = vmatpush1.msra.mxu0 0.0
    %191 = vmatprep.subr.mxu0 0.0
    %192 = vmatpush1.msra.mxu0 0.0
    %193 = vmatprep.subr.mxu0 0.0
    %194 = vmatpush1.msra.mxu0 0.0
    %195 = vmatprep.subr.mxu0 0.0
    %196 = vmatpush1.msra.mxu0 0.0
    %197 = vmatprep.subr.mxu0 0.0
    %198 = vmatpush1.msra.mxu0 0.0
    %199 = vmatprep.mubr.f32.mxu0 0.0
    %200 = vmatmul.mubr.f32.gmra.mrb[0].mxu0 %v130
    %v201 = vpop.f32.mrb[0].mxu0
    %v202 = vadd.f32 0.0, %v201
    %v203 = vpop.f32.mrb[0].mxu0
    %204 = vmatprep.mubr.f32.mxu0 0.0
    %205 = vmatmul.mubr.f32.gmra.mrb[0].mxu0 %v133
    %v206 = vpop.f32.mrb[0].mxu0
    %v207 = vadd.f32 0.0, %v206
    %v208 = vpop.f32.mrb[0].mxu0
    %209 = vdwg.mxu0
    %v210 = vmul.f32 %v202, 2.0
    %v211 = vmul.f32 %v207, 2.0
    %v212 = vsub.f32 %v210, %v127
    %v213 = vsub.f32 %v211, %v128
    %s214 = scalar_lea.vmem [#allocation2], 16
    %215 = vst.msk [vmem:[%s214] sm:$0xff] %vm95, %v212
    %216 = vst.msk [vmem:[%s214 + $0x8] sm:$0xff] %vm95, %v213
    // Predicated region
    $region6: #{tpu_custom_call.1} parent=1 // pred_check
      _
    $region7: #{tpu_custom_call.1} parent=1 // pred_check_branch
      %218 = sbr.rel (0) target = $region9
    $region8: #{tpu_custom_call.1} parent=1 // pred_region
      %s220 = ssub.s32 512, 512
      %221 = vsyncadd [#allocation3], %s220
      %s222 = sshll.u32 [#allocation2], 4
      %s223 = int_to_ptr.vmem [resolvable:$true] %s222
      %228 = dma.vmem_to_hbm [thread:$0]  %s223, 512, %s1, [#allocation3], 128, 128, 8
    $region9: #{tpu_custom_call.1} parent=1 // pred_fallthru
      _
    // Predicated region
    $region10: #{tpu_custom_call.1} parent=1 // pred_check
      _
    $region11: #{tpu_custom_call.1} parent=1 // pred_check_branch
      %230 = sbr.rel (0) target = $region13
    $region12: #{tpu_custom_call.1} parent=1 // pred_region
      %231 = dma.done [#allocation3], 512
    $region13: #{tpu_custom_call.1} parent=1 // pred_fallthru
      _
    %232 = vsyncpa [#allocation3], 1

</llo_original>
